<compile_context>
chip_gen: v5e
topology: v5e:2x2
jax: 0.10.0
libtpu: 0.0.40
codegen_flags: <defaults>
</compile_context>

<pallas_src>
import functools

import jax
import jax.numpy as jnp
from jax.experimental import pallas as pl
from jax.experimental.pallas import tpu as pltpu

_BN_EPS = 1e-5  # torch.nn.BatchNorm1d default eps


def _round_up(v, m):
    return -(-int(v) // int(m)) * int(m)


def _tpu_vmem_capacity_bytes():
    cap = 64 << 20  # conservative default: v7x per-TensorCore VMEM
    try:
        info = pltpu.get_tpu_info()
        c = int(getattr(info, "vmem_capacity_bytes", 0))
        if c > 0:
            cap = c
    except Exception:
        pass
    return cap


def _shared_ae_kernel(x_ref, *refs, n_layers, shift_offsets, feat_sizes):
    """Fused encode+decode for one batch tile, feature-major layout.

    Activations are (features, batch_tile): the batch tile sits on the lane
    axis so stores are unmasked and the MXU output lanes are fully used.

    refs layout (inputs then output):
      Wenc_0..Wenc_{L-1} : (D_{i+1}, D_i)       = enc_scale_i[:,None] * W_i.T
      Wdec_0..Wdec_{L-1} : (D_{L-1-j}, D_{L-j}) = dec_scale_j[:,None] * W_{L-1-j}
      shifts             : (S, 1) f32, all folded BN shifts packed
      out_ref            : (D0, TB)
    """
    L = n_layers
    w_refs = refs[:2 * L]
    shifts_ref = refs[2 * L]
    out_ref = refs[-1]

    h = x_ref[...]                                  # (D0, TB), native dtype
    for k in range(2 * L):
        w = w_refs[k][...]                          # (d_out, d_in), weight dtype
        # MXU matmul in native dtype, f32 accumulate.
        h = jnp.dot(w, h.astype(w.dtype), preferred_element_type=jnp.float32)
        off = shift_offsets[k]
        d_out = feat_sizes[k]
        shift = shifts_ref[off:off + d_out, :]      # (d_out, 1) f32, static slice
        h = jnp.maximum(h + shift, 0.0)             # folded BN shift + ReLU (f32)
    out_ref[...] = h.astype(out_ref.dtype)


def _choose_block_b(B, sizes, x_itemsize, out_itemsize, w_itemsize, budget):
    """Largest lane-aligned (multiple-of-128) batch tile fitting the budget."""
    L = len(sizes) - 1
    # Resident constants: enc + dec weight copies + packed shifts. Counted 2x
    # (Pallas may double-buffer even constant-index blocks).
    weight_bytes = w_itemsize * 2 * sum(sizes[i] * sizes[i + 1] for i in range(L))
    shift_bytes = 4 * sum(_round_up(d, 8) for d in (sizes[1:] + sizes[:-1][::-1]))
    resident = 2 * (weight_bytes + shift_bytes)
    # Per-batch-column bytes: double-buffered x/out tiles + f32 intermediates.
    io_per_col = 2 * sizes[0] * (x_itemsize + out_itemsize)
    act_per_col = 4 * 2 * (sum(sizes) + sum(sizes[1:-1]))
    per_col = io_per_col + act_per_col
    avail = max(budget - resident, 128 * per_col)
    tb = max(128, min(8192, (avail // per_col) // 128 * 128))
    if B <= tb:
        # Whole batch fits one tile; still split into >=2 lane-aligned tiles
        # when possible (v7x dual-TC + input/output DMA overlap).
        if B >= 256:
            half = _round_up((B + 1) // 2, 128)
            if half < B:
                return half
        return B
    return tb


def shared_ae_forward(x, weights, enc_bn, dec_bn, *, block_b=None, bn_eps=_BN_EPS):
    """Pallas TPU equivalent of SharedAE(layer_szs).forward(x) (eval-mode BN).

    Args:
      x:        (B, layer_szs[0]) array.
      weights:  list of L arrays; weights[i] has shape (layer_szs[i], layer_szs[i+1])
                (== torch ls[i].weight).
      enc_bn:   list of L tuples (gamma, beta, running_mean, running_var) for
                BatchNorm1d(layer_szs[i+1]), encoder order.
      dec_bn:   list of L tuples (gamma, beta, running_mean, running_var) for
                BatchNorm1d(layer_szs[L-1-j]), decoder order.
    """
    B, D0 = x.shape
    L = len(weights)
    sizes = [D0] + [int(w.shape[1]) for w in weights]
    assert int(weights[0].shape[0]) == D0

    w_dtype = weights[0].dtype
    out_dtype = x.dtype

    # --- fold eval-mode BN into scale-folded weight copies + shift vectors ----
    w_ops = []          # 2L constant weight copies (enc transposed, dec as-is)
    shift_list = []     # 2L per-feature shifts (f32)
    feat_sizes = []     # output feature count per chain step
    for i in range(L):
        g, b, m, v = enc_bn[i]
        scale = (g / jnp.sqrt(v + bn_eps)).astype(jnp.float32)
        shift = (b - m * scale).astype(jnp.float32)
        wT = weights[i].astype(jnp.float32).T                 # (D_{i+1}, D_i)
        w_ops.append((scale[:, None] * wT).astype(w_dtype))
        shift_list.append(shift)
        feat_sizes.append(sizes[i + 1])
    for j in range(L):
        i = L - 1 - j
        g, b, m, v = dec_bn[j]
        scale = (g / jnp.sqrt(v + bn_eps)).astype(jnp.float32)
        shift = (b - m * scale).astype(jnp.float32)
        w = weights[i].astype(jnp.float32)                    # (D_i, D_{i+1})
        w_ops.append((scale[:, None] * w).astype(w_dtype))
        shift_list.append(shift)
        feat_sizes.append(sizes[i])

    # --- pack all 2L shift vectors into one (S, 1) constant operand -----------
    segs, offsets, off = [], [], 0
    for s in shift_list:
        d = int(s.shape[0])
        d_pad = _round_up(d, 8)
        offsets.append(off)
        segs.append(jnp.zeros((d_pad,), jnp.float32).at[:d].set(s))
        off += d_pad
    shifts = jnp.concatenate(segs).reshape(-1, 1)

    # --- batch tile (lane axis), generation-aware VMEM budget -----------------
    cap = _tpu_vmem_capacity_bytes()
    budget = max(16 << 20, min(int(cap * 0.6), 96 << 20))
    if block_b is not None:
        TB = B if int(block_b) >= B else max(128, (int(block_b) // 128) * 128)
    else:
        TB = _choose_block_b(B, sizes, x.dtype.itemsize, out_dtype.itemsize,
                             jnp.dtype(w_dtype).itemsize, budget)
    grid = (pl.cdiv(B, TB),)

    # Feature-major activations: batch on the lane axis (layout plumbing only).
    x_t = jnp.transpose(x)                                    # (D0, B)

    x_map = lambda i: (0, i)
    const_map = lambda i: (0, 0)

    in_specs = [pl.BlockSpec((D0, TB), x_map)]
    operands = [x_t]
    for w in w_ops:
        in_specs.append(pl.BlockSpec(w.shape, const_map))
        operands.append(w)
    in_specs.append(pl.BlockSpec(shifts.shape, const_map))
    operands.append(shifts)

    kernel = functools.partial(_shared_ae_kernel, n_layers=L,
                               shift_offsets=tuple(offsets),
                               feat_sizes=tuple(feat_sizes))

    # Advisory cost hint: enc + dec matmuls; mem-bound otherwise.
    flops = 4 * B * sum(sizes[i] * sizes[i + 1] for i in range(L))
    bytes_accessed = (x.size * x.dtype.itemsize
                      + sum(w.size * w.dtype.itemsize for w in w_ops)
                      + shifts.size * 4
                      + B * D0 * out_dtype.itemsize)

    out_t = pl.pallas_call(
        kernel,
        out_shape=jax.ShapeDtypeStruct((D0, B), out_dtype),
        grid=grid,
        in_specs=in_specs,
        out_specs=pl.BlockSpec((D0, TB), x_map),
        compiler_params=pltpu.CompilerParams(
            dimension_semantics=("parallel",),
            vmem_limit_bytes=int(min(cap, budget + (16 << 20)))),
        cost_estimate=pl.CostEstimate(
            flops=int(flops), transcendentals=0,
            bytes_accessed=int(bytes_accessed)),
    )(*operands)

    return jnp.transpose(out_t)                               # (B, D0)


def _ref_forward(x, weights, enc_bn, dec_bn, bn_eps=_BN_EPS):
    """Pure-JAX reference mirroring the PyTorch forward (eval-mode BN)."""
    L = len(weights)
    h = x
    for i in range(L):
        h = h @ weights[i]
        g, b, m, v = enc_bn[i]
        h = (h - m) / jnp.sqrt(v + bn_eps) * g + b
        h = jnp.maximum(h, 0.0)
    for j, i in enumerate(reversed(range(L))):
        h = h @ weights[i].T
        g, b, m, v = dec_bn[j]
        h = (h - m) / jnp.sqrt(v + bn_eps) * g + b
        h = jnp.maximum(h, 0.0)
    return h


if __name__ == "__main__":
    key = jax.random.PRNGKey(0)
    layer_szs = [32, 64, 16]          # D0 -> D1 -> D2 (bottleneck)
    B = 256                           # lane-aligned batch -> 2 grid steps of 128
    L = len(layer_szs) - 1

    keys = list(jax.random.split(key, 1 + 3 * L))
    ki = iter(keys)

    x = jax.random.normal(next(ki), (B, layer_szs[0]), dtype=jnp.float32)

    weights = []
    for i in range(L):
        w = jax.random.normal(next(ki), (layer_szs[i], layer_szs[i + 1]),
                              dtype=jnp.float32) * (1.0 / float(layer_szs[i]) ** 0.5)
        weights.append(w)

    def make_bn(k, feat):
        k1, k2, k3, k4 = jax.random.split(k, 4)
        gamma = 1.0 + 0.1 * jax.random.normal(k1, (feat,), jnp.float32)
        beta = 0.1 * jax.random.normal(k2, (feat,), jnp.float32)
        mean = 0.1 * jax.random.normal(k3, (feat,), jnp.float32)
        var = 0.5 + jax.random.uniform(k4, (feat,), jnp.float32)
        return gamma, beta, mean, var

    enc_feats = layer_szs[1:]                 # [64, 16]
    dec_feats = layer_szs[:-1][::-1]          # [64, 32]
    enc_bn = [make_bn(next(ki), f) for f in enc_feats]
    dec_bn = [make_bn(next(ki), f) for f in dec_feats]  # independent keys

    out = shared_ae_forward(x, weights, enc_bn, dec_bn)
    jax.block_until_ready(out)

    ref = _ref_forward(x, weights, enc_bn, dec_bn)
    assert out.shape == (B, layer_szs[0])
    max_err = float(jnp.max(jnp.abs(out - ref)))
    assert jnp.allclose(out, ref, rtol=1e-3, atol=1e-3), max_err

    print("KERNEL_OK")
</pallas_src>

<mosaic_0001>
module attributes {stable_mosaic.version = 11 : i64} {
  func.func @_shared_ae_kernel(%arg0: i32, %arg1: memref<32x128xf32, #tpu.memory_space<vmem>>, %arg2: memref<64x32xf32, #tpu.memory_space<vmem>>, %arg3: memref<16x64xf32, #tpu.memory_space<vmem>>, %arg4: memref<64x16xf32, #tpu.memory_space<vmem>>, %arg5: memref<32x64xf32, #tpu.memory_space<vmem>>, %arg6: memref<176x1xf32, #tpu.memory_space<vmem>>, %arg7: memref<32x128xf32, #tpu.memory_space<vmem>>) attributes {dimension_semantics = [#tpu.dimension_semantics<parallel>], iteration_bounds = array<i64: 2>, scalar_prefetch = 0 : i64, scratch_operands = 0 : i64, tpu.core_type = #tpu.core_type<tc>, window_params = [{transform_indices = @transform_0, window_bounds = array<i64: 32, 128>}, {pipeline_mode = #tpu.pipeline_mode<synchronous>, transform_indices = @transform_1, window_bounds = array<i64: 64, 32>}, {pipeline_mode = #tpu.pipeline_mode<synchronous>, transform_indices = @transform_2, window_bounds = array<i64: 16, 64>}, {pipeline_mode = #tpu.pipeline_mode<synchronous>, transform_indices = @transform_3, window_bounds = array<i64: 64, 16>}, {pipeline_mode = #tpu.pipeline_mode<synchronous>, transform_indices = @transform_4, window_bounds = array<i64: 32, 64>}, {pipeline_mode = #tpu.pipeline_mode<synchronous>, transform_indices = @transform_5, window_bounds = array<i64: 176, 1>}, {transform_indices = @transform_6, window_bounds = array<i64: 32, 128>}]} {
    %c0 = arith.constant 0 : index
    %c0_0 = arith.constant 0 : index
    %0 = vector.load %arg1[%c0, %c0_0] : memref<32x128xf32, #tpu.memory_space<vmem>>, vector<32x128xf32>
    %c0_1 = arith.constant 0 : index
    %c0_2 = arith.constant 0 : index
    %1 = vector.load %arg2[%c0_1, %c0_2] : memref<64x32xf32, #tpu.memory_space<vmem>>, vector<64x32xf32>
    %cst = arith.constant dense<0.000000e+00> : vector<64x128xf32>
    %2 = tpu.matmul %1, %0, %cst {dimension_numbers = #tpu.dot_dimension_numbers<[1], [0], [0], [1], [0, 0, 1, 1], [], []>} : vector<64x32xf32>, vector<32x128xf32>, vector<64x128xf32> -> vector<64x128xf32>
    %c0_3 = arith.constant 0 : index
    %c0_4 = arith.constant 0 : index
    %3 = vector.load %arg6[%c0_3, %c0_4] : memref<176x1xf32, #tpu.memory_space<vmem>>, vector<64x1xf32>
    %4 = vector.broadcast %3 : vector<64x1xf32> to vector<64x128xf32>
    %5 = arith.addf %2, %4 : vector<64x128xf32>
    %cst_5 = arith.constant 0.000000e+00 : f32
    %6 = vector.broadcast %cst_5 : f32 to vector<64x128xf32>
    %7 = arith.maximumf %5, %6 : vector<64x128xf32>
    %c0_6 = arith.constant 0 : index
    %c0_7 = arith.constant 0 : index
    %8 = vector.load %arg3[%c0_6, %c0_7] : memref<16x64xf32, #tpu.memory_space<vmem>>, vector<16x64xf32>
    %cst_8 = arith.constant dense<0.000000e+00> : vector<16x128xf32>
    %9 = tpu.matmul %8, %7, %cst_8 {dimension_numbers = #tpu.dot_dimension_numbers<[1], [0], [0], [1], [0, 0, 1, 1], [], []>} : vector<16x64xf32>, vector<64x128xf32>, vector<16x128xf32> -> vector<16x128xf32>
    %c64 = arith.constant 64 : index
    %c0_9 = arith.constant 0 : index
    %10 = vector.load %arg6[%c64, %c0_9] : memref<176x1xf32, #tpu.memory_space<vmem>>, vector<16x1xf32>
    %11 = vector.broadcast %10 : vector<16x1xf32> to vector<16x128xf32>
    %12 = arith.addf %9, %11 : vector<16x128xf32>
    %cst_10 = arith.constant 0.000000e+00 : f32
    %13 = vector.broadcast %cst_10 : f32 to vector<16x128xf32>
    %14 = arith.maximumf %12, %13 : vector<16x128xf32>
    %c0_11 = arith.constant 0 : index
    %c0_12 = arith.constant 0 : index
    %15 = vector.load %arg4[%c0_11, %c0_12] : memref<64x16xf32, #tpu.memory_space<vmem>>, vector<64x16xf32>
    %cst_13 = arith.constant dense<0.000000e+00> : vector<64x128xf32>
    %16 = tpu.matmul %15, %14, %cst_13 {dimension_numbers = #tpu.dot_dimension_numbers<[1], [0], [0], [1], [0, 0, 1, 1], [], []>} : vector<64x16xf32>, vector<16x128xf32>, vector<64x128xf32> -> vector<64x128xf32>
    %c80 = arith.constant 80 : index
    %c0_14 = arith.constant 0 : index
    %17 = vector.load %arg6[%c80, %c0_14] : memref<176x1xf32, #tpu.memory_space<vmem>>, vector<64x1xf32>
    %18 = vector.broadcast %17 : vector<64x1xf32> to vector<64x128xf32>
    %19 = arith.addf %16, %18 : vector<64x128xf32>
    %cst_15 = arith.constant 0.000000e+00 : f32
    %20 = vector.broadcast %cst_15 : f32 to vector<64x128xf32>
    %21 = arith.maximumf %19, %20 : vector<64x128xf32>
    %c0_16 = arith.constant 0 : index
    %c0_17 = arith.constant 0 : index
    %22 = vector.load %arg5[%c0_16, %c0_17] : memref<32x64xf32, #tpu.memory_space<vmem>>, vector<32x64xf32>
    %cst_18 = arith.constant dense<0.000000e+00> : vector<32x128xf32>
    %23 = tpu.matmul %22, %21, %cst_18 {dimension_numbers = #tpu.dot_dimension_numbers<[1], [0], [0], [1], [0, 0, 1, 1], [], []>} : vector<32x64xf32>, vector<64x128xf32>, vector<32x128xf32> -> vector<32x128xf32>
    %c144 = arith.constant 144 : index
    %c0_19 = arith.constant 0 : index
    %24 = vector.load %arg6[%c144, %c0_19] : memref<176x1xf32, #tpu.memory_space<vmem>>, vector<32x1xf32>
    %25 = vector.broadcast %24 : vector<32x1xf32> to vector<32x128xf32>
    %26 = arith.addf %23, %25 : vector<32x128xf32>
    %cst_20 = arith.constant 0.000000e+00 : f32
    %27 = vector.broadcast %cst_20 : f32 to vector<32x128xf32>
    %28 = arith.maximumf %26, %27 : vector<32x128xf32>
    %c0_21 = arith.constant 0 : index
    %c0_22 = arith.constant 0 : index
    %29 = vector.load %arg7[%c0_21, %c0_22] : memref<32x128xf32, #tpu.memory_space<vmem>>, vector<32x128xf32>
    tpu.vector_store %arg7[%c0_21, %c0_22], %28 {strides = array<i32>} : memref<32x128xf32, #tpu.memory_space<vmem>>, vector<32x128xf32>,
    return
  }
  func.func @transform_0(%arg0: i32) -> (i32, i32) {
    %c0_i32 = arith.constant 0 : i32
    %c0_i32_0 = arith.constant 0 : i32
    return %c0_i32, %arg0 : i32, i32
  }
  func.func @transform_1(%arg0: i32) -> (i32, i32) {
    %c0_i32 = arith.constant 0 : i32
    %c0_i32_0 = arith.constant 0 : i32
    %c0_i32_1 = arith.constant 0 : i32
    return %c0_i32, %c0_i32_0 : i32, i32
  }
  func.func @transform_2(%arg0: i32) -> (i32, i32) {
    %c0_i32 = arith.constant 0 : i32
    %c0_i32_0 = arith.constant 0 : i32
    %c0_i32_1 = arith.constant 0 : i32
    return %c0_i32, %c0_i32_0 : i32, i32
  }
  func.func @transform_3(%arg0: i32) -> (i32, i32) {
    %c0_i32 = arith.constant 0 : i32
    %c0_i32_0 = arith.constant 0 : i32
    %c0_i32_1 = arith.constant 0 : i32
    return %c0_i32, %c0_i32_0 : i32, i32
  }
  func.func @transform_4(%arg0: i32) -> (i32, i32) {
    %c0_i32 = arith.constant 0 : i32
    %c0_i32_0 = arith.constant 0 : i32
    %c0_i32_1 = arith.constant 0 : i32
    return %c0_i32, %c0_i32_0 : i32, i32
  }
  func.func @transform_5(%arg0: i32) -> (i32, i32) {
    %c0_i32 = arith.constant 0 : i32
    %c0_i32_0 = arith.constant 0 : i32
    %c0_i32_1 = arith.constant 0 : i32
    return %c0_i32, %c0_i32_0 : i32, i32
  }
  func.func @transform_6(%arg0: i32) -> (i32, i32) {
    %c0_i32 = arith.constant 0 : i32
    %c0_i32_0 = arith.constant 0 : i32
    return %c0_i32, %arg0 : i32, i32
  }
}

</mosaic_0001>

<llo_original>
// kernel: tpu_custom_call.1
$region0: #{tpu_custom_call.1}
  #allocation0 [shape = 'u32[]', space=smem, size = 0x4, offset = 0x4, fixed_abs, tag = 'smem constant byte address 0x4 - core index']
  #allocation1 [shape = 'u32[72,128]{1,0:T(1,128)}', space=vmem, size = 0x9000, scoped, tag = 'internal scratch']
  %s0 = inlined_call_operand.vmem [shape: f32[32,256], index: 0, kind: input, shape index: {}]
  %s1 = inlined_call_operand.vmem [shape: f32[64,32], index: 1, kind: input, shape index: {}]
  %s2 = inlined_call_operand.vmem [shape: f32[16,64], index: 2, kind: input, shape index: {}]
  %s3 = inlined_call_operand.vmem [shape: f32[64,16], index: 3, kind: input, shape index: {}]
  %s4 = inlined_call_operand.vmem [shape: f32[32,64], index: 4, kind: input, shape index: {}]
  %s5 = inlined_call_operand.vmem [shape: f32[176,1], index: 5, kind: input, shape index: {}]
  %s6 = inlined_call_operand.hbm [shape: f32[32,256], index: 6, kind: output, shape index: {}]
  %s7 = sld [smem:[#allocation0]]
  $region95: #{tpu_custom_call.1} parent=0
    _
  %s9 = ssub.s32 1, %s7
  %s10 = scalar_select 0, %s9, %s7
  $region1: #{tpu_custom_call.1} parent=0
    #allocation2 [shape = 'u8[32768]{0}', space=vmem, size = 0x8000, scoped, tag = 'input window, operand 0']
    #allocation3 [shape = 'u8[32768]{0}', space=vmem, size = 0x8000, scoped, tag = 'output window, operand 0']
    #allocation4 [shape = 's32[2]{0}', space=sflag, size = 0x8, scoped, tag = 'scoped memory for tpu_custom_call.1']
    %11 = vsyncpa [#allocation4], 0
    %s12 = scalar_lea.sflag [#allocation4], 1
    %13 = vsyncpa %s12, 0
    loop: start=0, step=1, limit=4
    $region2: #{tpu_custom_call.1} parent=1 // loop_pre_header
      _
    $region3: #{tpu_custom_call.1} parent=1 // loop_header
      %s15 = sphi 0, %s19
      %p16 = scmp.ge.s32.totalorder %s15, 4
      %s25 = sphi 0, %s27
      %s28 = sphi 0, %s25
      %s29 = sphi 0, %s28
      %s45 = sphi 0, %s29
      %s49 = sphi 0, %s49
      %s51 = sphi 0, %s49
      %s52 = sphi 0, %s51
      %s66 = sphi 0, %s52
      %s70 = sphi 0, %s70
      %s72 = sphi 0, %s70
      %s73 = sphi 0, %s72
      %s87 = sphi 0, %s73
      %s91 = sphi 0, %s91
      %s93 = sphi 0, %s91
      %s94 = sphi 0, %s93
      %s108 = sphi 0, %s94
      %s112 = sphi 0, %s112
      %s114 = sphi 0, %s112
      %s115 = sphi 0, %s114
      %s129 = sphi 0, %s115
      %s133 = sphi 0, %s133
      %s135 = sphi 0, %s133
      %s136 = sphi 0, %s135
      %s150 = sphi 0, %s136
      %s156 = sphi 0, %s158
      %s159 = sphi 0, %s156
      %s160 = sphi 0, %s159
      %s176 = sphi 0, %s160
    $region4: #{tpu_custom_call.1} parent=1 // loop_header_branch
      %18 = sbr.rel (%p16) target = $region8
    $region5: #{tpu_custom_call.1} parent=1 // loop_body
      %s20 = ssub.s32 %s15, 1
      %s21 = ssub.s32 %s15, 2
      %s22 = sadd.s32 %s15, 1
      %s23 = ssub.s32 %s15, %s22
      %p24 = scmp.eq.s32.totalorder %s23, 0
      %s26 = sadd.s32 %s25, 1
      %s27 = scalar_select %p24, %s25, %s26
      %p30 = pneg %p24
      %p31 = scmp.eq.s32.totalorder %s15, 1
      %p32 = por %p30, %p31
      %p33 = scmp.ne.s32.totalorder %s25, %s28
      %p34 = scmp.eq.s32.totalorder %s15, 0
      %p35 = por %p33, %p34
      %p36 = scmp.ne.s32.totalorder %s25, %s28
      %p37 = scmp.eq.s32.totalorder %s20, 1
      %p38 = por %p36, %p37
      %p39 = scmp.ne.s32.totalorder %s28, %s29
      %p40 = scmp.eq.s32.totalorder %s20, 0
      %p41 = por %p39, %p40
      %p42 = scmp.ne.s32.totalorder %s28, %s29
      %p43 = scmp.eq.s32.totalorder %s21, 1
      %p44 = por %p42, %p43
      %p46 = scmp.ne.s32.totalorder %s29, %s45
      %p47 = scmp.eq.s32.totalorder %s21, 0
      %p48 = por %p46, %p47
      %s50 = sadd.s32 %s49, 1
      %p53 = scmp.eq.s32.totalorder %s15, 1
      %p54 = scmp.ne.s32.totalorder %s49, %s51
      %p55 = scmp.eq.s32.totalorder %s15, 0
      %p56 = por %p54, %p55
      %p57 = scmp.ne.s32.totalorder %s49, %s51
      %p58 = scmp.eq.s32.totalorder %s20, 1
      %p59 = por %p57, %p58
      %p60 = scmp.ne.s32.totalorder %s51, %s52
      %p61 = scmp.eq.s32.totalorder %s20, 0
      %p62 = por %p60, %p61
      %p63 = scmp.ne.s32.totalorder %s51, %s52
      %p64 = scmp.eq.s32.totalorder %s21, 1
      %p65 = por %p63, %p64
      %p67 = scmp.ne.s32.totalorder %s52, %s66
      %p68 = scmp.eq.s32.totalorder %s21, 0
      %p69 = por %p67, %p68
      %s71 = sadd.s32 %s70, 1
      %p74 = scmp.eq.s32.totalorder %s15, 1
      %p75 = scmp.ne.s32.totalorder %s70, %s72
      %p76 = scmp.eq.s32.totalorder %s15, 0
      %p77 = por %p75, %p76
      %p78 = scmp.ne.s32.totalorder %s70, %s72
      %p79 = scmp.eq.s32.totalorder %s20, 1
      %p80 = por %p78, %p79
      %p81 = scmp.ne.s32.totalorder %s72, %s73
      %p82 = scmp.eq.s32.totalorder %s20, 0
      %p83 = por %p81, %p82
      %p84 = scmp.ne.s32.totalorder %s72, %s73
      %p85 = scmp.eq.s32.totalorder %s21, 1
      %p86 = por %p84, %p85
      %p88 = scmp.ne.s32.totalorder %s73, %s87
      %p89 = scmp.eq.s32.totalorder %s21, 0
      %p90 = por %p88, %p89
      %s92 = sadd.s32 %s91, 1
      %p95 = scmp.eq.s32.totalorder %s15, 1
      %p96 = scmp.ne.s32.totalorder %s91, %s93
      %p97 = scmp.eq.s32.totalorder %s15, 0
      %p98 = por %p96, %p97
      %p99 = scmp.ne.s32.totalorder %s91, %s93
      %p100 = scmp.eq.s32.totalorder %s20, 1
      %p101 = por %p99, %p100
      %p102 = scmp.ne.s32.totalorder %s93, %s94
      %p103 = scmp.eq.s32.totalorder %s20, 0
      %p104 = por %p102, %p103
      %p105 = scmp.ne.s32.totalorder %s93, %s94
      %p106 = scmp.eq.s32.totalorder %s21, 1
      %p107 = por %p105, %p106
      %p109 = scmp.ne.s32.totalorder %s94, %s108
      %p110 = scmp.eq.s32.totalorder %s21, 0
      %p111 = por %p109, %p110
      %s113 = sadd.s32 %s112, 1
      %p116 = scmp.eq.s32.totalorder %s15, 1
      %p117 = scmp.ne.s32.totalorder %s112, %s114
      %p118 = scmp.eq.s32.totalorder %s15, 0
      %p119 = por %p117, %p118
      %p120 = scmp.ne.s32.totalorder %s112, %s114
      %p121 = scmp.eq.s32.totalorder %s20, 1
      %p122 = por %p120, %p121
      %p123 = scmp.ne.s32.totalorder %s114, %s115
      %p124 = scmp.eq.s32.totalorder %s20, 0
      %p125 = por %p123, %p124
      %p126 = scmp.ne.s32.totalorder %s114, %s115
      %p127 = scmp.eq.s32.totalorder %s21, 1
      %p128 = por %p126, %p127
      %p130 = scmp.ne.s32.totalorder %s115, %s129
      %p131 = scmp.eq.s32.totalorder %s21, 0
      %p132 = por %p130, %p131
      %s134 = sadd.s32 %s133, 1
      %p137 = scmp.eq.s32.totalorder %s15, 1
      %p138 = scmp.ne.s32.totalorder %s133, %s135
      %p139 = scmp.eq.s32.totalorder %s15, 0
      %p140 = por %p138, %p139
      %p141 = scmp.ne.s32.totalorder %s133, %s135
      %p142 = scmp.eq.s32.totalorder %s20, 1
      %p143 = por %p141, %p142
      %p144 = scmp.ne.s32.totalorder %s135, %s136
      %p145 = scmp.eq.s32.totalorder %s20, 0
      %p146 = por %p144, %p145
      %p147 = scmp.ne.s32.totalorder %s135, %s136
      %p148 = scmp.eq.s32.totalorder %s21, 1
      %p149 = por %p147, %p148
      %p151 = scmp.ne.s32.totalorder %s136, %s150
      %p152 = scmp.eq.s32.totalorder %s21, 0
      %p153 = por %p151, %p152
      %s154 = ssub.s32 %s15, %s22
      %p155 = scmp.eq.s32.totalorder %s154, 0
      %s157 = sadd.s32 %s156, 1
      %s158 = scalar_select %p155, %s156, %s157
      %p161 = pneg %p155
      %p162 = scmp.eq.s32.totalorder %s15, 1
      %p163 = por %p161, %p162
      %p164 = scmp.ne.s32.totalorder %s156, %s159
      %p165 = scmp.eq.s32.totalorder %s15, 0
      %p166 = por %p164, %p165
      %p167 = scmp.ne.s32.totalorder %s156, %s159
      %p168 = scmp.eq.s32.totalorder %s20, 1
      %p169 = por %p167, %p168
      %p170 = scmp.ne.s32.totalorder %s159, %s160
      %p171 = scmp.eq.s32.totalorder %s20, 0
      %p172 = por %p170, %p171
      %p173 = scmp.ne.s32.totalorder %s159, %s160
      %p174 = scmp.eq.s32.totalorder %s21, 1
      %p175 = por %p173, %p174
      %p177 = scmp.ne.s32.totalorder %s160, %s176
      %p178 = scmp.eq.s32.totalorder %s21, 0
      %p179 = por %p177, %p178
      %p180 = scmp.le.s32.totalorder 1, %s15
      %p181 = scmp.lt.s32.totalorder %s15, 3
      %p182 = pnand %p180, %p181
      %p183 = pneg %p182
      // Predicated region
      $region9: #{tpu_custom_call.1} parent=5 // pred_check
        _
      $region10: #{tpu_custom_call.1} parent=5 // pred_check_branch
        %185 = sbr.rel (%p182) target = $region12
      $region11: #{tpu_custom_call.1} parent=5 // pred_region
        %s186 = ssub.s32 %s15, 1
        // Predicated region
        $region13: #{tpu_custom_call.1} parent=11 // pred_check
          %p187 = pneg %p62
        $region14: #{tpu_custom_call.1} parent=11 // pred_check_branch
          %189 = sbr.rel (%p187) target = $region16
        $region15: #{tpu_custom_call.1} parent=11 // pred_region
          _
        $region16: #{tpu_custom_call.1} parent=11 // pred_fallthru
          _
        // Predicated region
        $region17: #{tpu_custom_call.1} parent=11 // pred_check
          %p190 = pneg %p83
        $region18: #{tpu_custom_call.1} parent=11 // pred_check_branch
          %192 = sbr.rel (%p190) target = $region20
        $region19: #{tpu_custom_call.1} parent=11 // pred_region
          _
        $region20: #{tpu_custom_call.1} parent=11 // pred_fallthru
          _
        // Predicated region
        $region21: #{tpu_custom_call.1} parent=11 // pred_check
          %p193 = pneg %p104
        $region22: #{tpu_custom_call.1} parent=11 // pred_check_branch
          %195 = sbr.rel (%p193) target = $region24
        $region23: #{tpu_custom_call.1} parent=11 // pred_region
          _
        $region24: #{tpu_custom_call.1} parent=11 // pred_fallthru
          _
        // Predicated region
        $region25: #{tpu_custom_call.1} parent=11 // pred_check
          %p196 = pneg %p125
        $region26: #{tpu_custom_call.1} parent=11 // pred_check_branch
          %198 = sbr.rel (%p196) target = $region28
        $region27: #{tpu_custom_call.1} parent=11 // pred_region
          _
        $region28: #{tpu_custom_call.1} parent=11 // pred_fallthru
          _
        // Predicated region
        $region29: #{tpu_custom_call.1} parent=11 // pred_check
          %p199 = pneg %p146
        $region30: #{tpu_custom_call.1} parent=11 // pred_check_branch
          %201 = sbr.rel (%p199) target = $region32
        $region31: #{tpu_custom_call.1} parent=11 // pred_region
          _
        $region32: #{tpu_custom_call.1} parent=11 // pred_fallthru
          _
      $region12: #{tpu_custom_call.1} parent=5 // pred_fallthru
        _
      %p202 = scmp.lt.s32.totalorder %s15, 2
      // Predicated region
      $region33: #{tpu_custom_call.1} parent=5 // pred_check
        %p203 = pneg %p202
      $region34: #{tpu_custom_call.1} parent=5 // pred_check_branch
        %205 = sbr.rel (%p203) target = $region36
      $region35: #{tpu_custom_call.1} parent=5 // pred_region
        // Predicated region
        $region37: #{tpu_custom_call.1} parent=35 // pred_check
          %p206 = pneg %p35
        $region38: #{tpu_custom_call.1} parent=35 // pred_check_branch
          %208 = sbr.rel (%p206) target = $region40
        $region39: #{tpu_custom_call.1} parent=35 // pred_region
          %s209 = sand.u32 %s25, 1
          %s210 = sand.u32 %s25, 1
          %s211 = smul.addr %s210, 32
          %s212 = scalar_lea.vmem [#allocation2], %s211
          %s213 = smul.addr %s15, 8
          %s214 = scalar_lea.vmem %s0, %s213
          // Predicated region
          $region41: #{tpu_custom_call.1} parent=39 // pred_check
            _
          $region42: #{tpu_custom_call.1} parent=39 // pred_check_branch
            %216 = sbr.rel (0) target = $region44
          $region43: #{tpu_custom_call.1} parent=39 // pred_region
            // Predicated region
            $region45: #{tpu_custom_call.1} parent=43 // pred_check
              _
            $region46: #{tpu_custom_call.1} parent=43 // pred_check_branch
              %218 = sbr.rel (0) target = $region48
            $region47: #{tpu_custom_call.1} parent=43 // pred_region
              // Predicated region
              $region60: #{tpu_custom_call.1} parent=47 // pred_check
                _
              $region61: #{tpu_custom_call.1} parent=47 // pred_check_branch
                %240 = sbr.rel (0) target = $region63
              $region62: #{tpu_custom_call.1} parent=47 // pred_region
                loop: start=0, step=1, limit=1
                $region64: #{tpu_custom_call.1} parent=62 // loop_pre_header
                  _
                $region65: #{tpu_custom_call.1} parent=62 // loop_header
                  %s242 = sphi 0, %s246
                  %p243 = scmp.ge.s32.totalorder %s242, 1
                  %s247 = sphi %s214, %s214
                  %s248 = sphi %s212, %s212
                $region66: #{tpu_custom_call.1} parent=62 // loop_header_branch
                  %245 = sbr.rel (%p243) target = $region70
                $region67: #{tpu_custom_call.1} parent=62 // loop_body
                  %v249 = vld [vmem:[%s247] sm:$0xff]
                  %250 = vst [vmem:[%s248] sm:$0xff] %v249
                  %v251 = vld [vmem:[%s247 + $0x10] sm:$0xff]
                  %252 = vst [vmem:[%s248 + $0x8] sm:$0xff] %v251
                  %v253 = vld [vmem:[%s247 + $0x20] sm:$0xff]
                  %254 = vst [vmem:[%s248 + $0x10] sm:$0xff] %v253
                  %v255 = vld [vmem:[%s247 + $0x30] sm:$0xff]
                  %256 = vst [vmem:[%s248 + $0x18] sm:$0xff] %v255
                $region68: #{tpu_custom_call.1} parent=62 // loop_footer
                  %s246 = sadd.s32 1, %s242
                $region69: #{tpu_custom_call.1} parent=62 // loop_footer_branch
                  %241 = sbr.rel target = $region65
                $region70: #{tpu_custom_call.1} parent=62 // loop_exit
                  _
              $region63: #{tpu_custom_call.1} parent=47 // pred_fallthru
                _
              // Predicated region
              $region71: #{tpu_custom_call.1} parent=47 // pred_check
                _
              $region72: #{tpu_custom_call.1} parent=47 // pred_check_branch
                %258 = sbr.rel target = $region74
              $region73: #{tpu_custom_call.1} parent=47 // pred_region
                _
              $region74: #{tpu_custom_call.1} parent=47 // pred_fallthru
                _
            $region48: #{tpu_custom_call.1} parent=43 // pred_fallthru
              _
            // Predicated region
            $region49: #{tpu_custom_call.1} parent=43 // pred_check
              _
            $region50: #{tpu_custom_call.1} parent=43 // pred_check_branch
              %220 = sbr.rel target = $region52
            $region51: #{tpu_custom_call.1} parent=43 // pred_region
              %s222 = ssub.s32 256, 1
              loop: start=0, step=1, limit=1
              $region53: #{tpu_custom_call.1} parent=51 // loop_pre_header
                _
              $region54: #{tpu_custom_call.1} parent=51 // loop_header
                %s224 = sphi 0, %s228
                %p225 = scmp.ge.s32.totalorder %s224, 1
                %s229 = sphi %s214, %s214
                %s230 = sphi %s212, %s212
              $region55: #{tpu_custom_call.1} parent=51 // loop_header_branch
                %227 = sbr.rel (%p225) target = $region59
              $region56: #{tpu_custom_call.1} parent=51 // loop_body
                %v231 = vld [vmem:[%s229] sm:%s222]
                %232 = vst [vmem:[%s230] sm:%s222] %v231
                %v233 = vld [vmem:[%s229 + $0x10] sm:%s222]
                %234 = vst [vmem:[%s230 + $0x8] sm:%s222] %v233
                %v235 = vld [vmem:[%s229 + $0x20] sm:%s222]
                %236 = vst [vmem:[%s230 + $0x10] sm:%s222] %v235
                %v237 = vld [vmem:[%s229 + $0x30] sm:%s222]
                %238 = vst [vmem:[%s230 + $0x18] sm:%s222] %v237
              $region57: #{tpu_custom_call.1} parent=51 // loop_footer
                %s228 = sadd.s32 1, %s224
              $region58: #{tpu_custom_call.1} parent=51 // loop_footer_branch
                %223 = sbr.rel target = $region54
              $region59: #{tpu_custom_call.1} parent=51 // loop_exit
                _
            $region52: #{tpu_custom_call.1} parent=43 // pred_fallthru
              _
          $region44: #{tpu_custom_call.1} parent=39 // pred_fallthru
            _
          %259 = vnop
        $region40: #{tpu_custom_call.1} parent=35 // pred_fallthru
          _
      $region36: #{tpu_custom_call.1} parent=5 // pred_fallthru
        _
      %p260 = scmp.le.s32.totalorder 1, %s15
      %p261 = scmp.lt.s32.totalorder %s15, 3
      %p262 = pnand %p260, %p261
      %p263 = pneg %p262
      // Predicated region
      $region75: #{tpu_custom_call.1} parent=5 // pred_check
        _
      $region76: #{tpu_custom_call.1} parent=5 // pred_check_branch
        %265 = sbr.rel (%p262) target = $region78
      $region77: #{tpu_custom_call.1} parent=5 // pred_region
        %s266 = ssub.s32 %s15, 1
        %s267 = sand.u32 %s28, 1
        %s268 = sand.u32 %s28, 1
        %s269 = smul.addr %s268, 32
        %s270 = scalar_lea.vmem [#allocation2], %s269
        // Predicated region
        $region79: #{tpu_custom_call.1} parent=77 // pred_check
          %p271 = pneg %p41
        $region80: #{tpu_custom_call.1} parent=77 // pred_check_branch
          %273 = sbr.rel (%p271) target = $region82
        $region81: #{tpu_custom_call.1} parent=77 // pred_region
          _
        $region82: #{tpu_custom_call.1} parent=77 // pred_fallthru
          _
        %s274 = sand.u32 %s28, 1
        %s275 = sand.u32 %s28, 1
        %s276 = smul.addr %s275, 32
        %s277 = scalar_lea.vmem [#allocation2], %s276
        %p278 = pneg %p41
        %p279 = pneg %p38
        %p280 = pneg %p62
        %p281 = pneg %p59
        %p282 = pneg %p83
        %p283 = pneg %p80
        %p284 = pneg %p104
        %p285 = pneg %p101
        %p286 = pneg %p125
        %p287 = pneg %p122
        %p288 = pneg %p146
        %p289 = pneg %p143
        %p290 = pneg %p172
        %p291 = pneg %p169
        %s292 = sand.u32 %s159, 1
        %s293 = scalar_lea.sflag [#allocation4], %s292
        %s294 = sand.u32 %s159, 1
        %s295 = smul.addr %s294, 32
        %s296 = scalar_lea.vmem [#allocation3], %s295
        %v297 = vld [vmem:[%s270] sm:$0xff]
        %v298 = vld [vmem:[%s270 + $0x8] sm:$0xff]
        %v299 = vld [vmem:[%s270 + $0x10] sm:$0xff]
        %v300 = vld [vmem:[%s270 + $0x18] sm:$0xff]
        %v301 = vld [vmem:[%s1] sm:$0xff]
        %v302 = vld [vmem:[%s1 + $0x8] sm:$0xff]
        %v303 = vld [vmem:[%s1 + $0x10] sm:$0xff]
        %v304 = vld [vmem:[%s1 + $0x18] sm:$0xff]
        %v305 = vld [vmem:[%s1 + $0x20] sm:$0xff]
        %v306 = vld [vmem:[%s1 + $0x28] sm:$0xff]
        %v307 = vld [vmem:[%s1 + $0x30] sm:$0xff]
        %v308 = vld [vmem:[%s1 + $0x38] sm:$0xff]
        %v309 = vld [vmem:[%s5] sm:$0xff]
        %v310 = vld [vmem:[%s5 + $0x8] sm:$0xff]
        %v311 = vld [vmem:[%s5 + $0x10] sm:$0xff]
        %v312 = vld [vmem:[%s5 + $0x18] sm:$0xff]
        %v313 = vld [vmem:[%s5 + $0x20] sm:$0xff]
        %v314 = vld [vmem:[%s5 + $0x28] sm:$0xff]
        %v315 = vld [vmem:[%s5 + $0x30] sm:$0xff]
        %v316 = vld [vmem:[%s5 + $0x38] sm:$0xff]
        %318 = vset.pattern.permute.xlu0 0
        %319 = vperm.xlu0 %318, %v309
        %v320 = vpop.permute.xlu0 %319
        %323 = vset.pattern.permute.xlu0 0
        %324 = vperm.xlu0 %323, %v310
        %v325 = vpop.permute.xlu0 %324
        %328 = vset.pattern.permute.xlu0 0
        %329 = vperm.xlu0 %328, %v311
        %v330 = vpop.permute.xlu0 %329
        %333 = vset.pattern.permute.xlu0 0
        %334 = vperm.xlu0 %333, %v312
        %v335 = vpop.permute.xlu0 %334
        %338 = vset.pattern.permute.xlu0 0
        %339 = vperm.xlu0 %338, %v313
        %v340 = vpop.permute.xlu0 %339
        %343 = vset.pattern.permute.xlu0 0
        %344 = vperm.xlu0 %343, %v314
        %v345 = vpop.permute.xlu0 %344
        %348 = vset.pattern.permute.xlu0 0
        %349 = vperm.xlu0 %348, %v315
        %v350 = vpop.permute.xlu0 %349
        %353 = vset.pattern.permute.xlu0 0
        %354 = vperm.xlu0 %353, %v316
        %v355 = vpop.permute.xlu0 %354
        %vm357 = vcmask 261120
        %v359 = vsel %vm357, %v301, 0
        %v362 = vsel %vm357, %v302, 0
        %v365 = vsel %vm357, %v303, 0
        %v368 = vsel %vm357, %v304, 0
        %v371 = vsel %vm357, %v305, 0
        %v374 = vsel %vm357, %v306, 0
        %v377 = vsel %vm357, %v307, 0
        %v380 = vsel %vm357, %v308, 0
        %382 = vmatpush.msra.mxu0 0.0
        %383 = vmatpush.msra.mxu0 0.0
        %384 = vmatpush.msra.mxu0 0.0
        %385 = vmatpush.msra.mxu0 0.0
        %386 = vmatpush.msra.mxu0 0.0
        %387 = vmatpush.msra.mxu0 0.0
        %388 = vmatpush.msra.mxu0 0.0
        %389 = vmatpush.msra.mxu0 0.0
        %390 = vmatpush.msra.mxu0 0.0
        %391 = vmatpush.msra.mxu0 0.0
        %392 = vmatpush.msra.mxu0 0.0
        %393 = vmatpush.msra.mxu0 0.0
        %394 = vmatpush.msra.mxu0 %v300
        %395 = vmatpush.msra.mxu0 %v299
        %396 = vmatpush.msra.mxu0 %v298
        %397 = vmatpush.msra.mxu0 %v297
        %398 = vmatmul.f32.gmra.mxu0 %v359
        %v399 = vpop.f32.mrf.mxu0
        %v400 = vadd.f32 %v320, %v399
        %401 = vmatmul.f32.gmra.mxu0 %v362
        %v402 = vpop.f32.mrf.mxu0
        %v403 = vadd.f32 %v325, %v402
        %404 = vmatmul.f32.gmra.mxu0 %v365
        %v405 = vpop.f32.mrf.mxu0
        %v406 = vadd.f32 %v330, %v405
        %407 = vmatmul.f32.gmra.mxu0 %v368
        %v408 = vpop.f32.mrf.mxu0
        %v409 = vadd.f32 %v335, %v408
        %410 = vmatmul.f32.gmra.mxu0 %v371
        %v411 = vpop.f32.mrf.mxu0
        %v412 = vadd.f32 %v340, %v411
        %413 = vmatmul.f32.gmra.mxu0 %v374
        %v414 = vpop.f32.mrf.mxu0
        %v415 = vadd.f32 %v345, %v414
        %416 = vmatmul.f32.gmra.mxu0 %v377
        %v417 = vpop.f32.mrf.mxu0
        %v418 = vadd.f32 %v350, %v417
        %419 = vmatmul.f32.gmra.mxu0 %v380
        %v420 = vpop.f32.mrf.mxu0
        %v421 = vadd.f32 %v355, %v420
        %422 = vdwg.mxu0
        %v423 = vmax.f32 %v400, 0.0
        %v424 = vmax.f32 %v403, 0.0
        %v425 = vmax.f32 %v406, 0.0
        %v426 = vmax.f32 %v409, 0.0
        %v427 = vmax.f32 %v412, 0.0
        %v428 = vmax.f32 %v415, 0.0
        %v429 = vmax.f32 %v418, 0.0
        %v430 = vmax.f32 %v421, 0.0
        %v431 = vld [vmem:[%s2] sm:$0xff]
        %v432 = vld [vmem:[%s2 + $0x8] sm:$0xff]
        %v433 = vld [vmem:[%s5 + $0x40] sm:$0xff]
        %v434 = vld [vmem:[%s5 + $0x48] sm:$0xff]
        %436 = vset.pattern.permute.xlu0 0
        %437 = vperm.xlu0 %436, %v433
        %v438 = vpop.permute.xlu0 %437
        %441 = vset.pattern.permute.xlu0 0
        %442 = vperm.xlu0 %441, %v434
        %v443 = vpop.permute.xlu0 %442
        %vm445 = vcmask 523264
        %v447 = vsel %vm445, %v431, 0
        %v450 = vsel %vm445, %v432, 0
        %452 = vmatpush.msra.mxu0 0.0
        %453 = vmatpush.msra.mxu0 0.0
        %454 = vmatpush.msra.mxu0 0.0
        %455 = vmatpush.msra.mxu0 0.0
        %456 = vmatpush.msra.mxu0 0.0
        %457 = vmatpush.msra.mxu0 0.0
        %458 = vmatpush.msra.mxu0 0.0
        %459 = vmatpush.msra.mxu0 0.0
        %460 = vmatpush.msra.mxu0 %v430
        %461 = vmatpush.msra.mxu0 %v429
        %462 = vmatpush.msra.mxu0 %v428
        %463 = vmatpush.msra.mxu0 %v427
        %464 = vmatpush.msra.mxu0 %v426
        %465 = vmatpush.msra.mxu0 %v425
        %466 = vmatpush.msra.mxu0 %v424
        %467 = vmatpush.msra.mxu0 %v423
        %468 = vmatmul.f32.gmra.mxu0 %v447
        %v469 = vpop.f32.mrf.mxu0
        %v470 = vadd.f32 %v438, %v469
        %471 = vmatmul.f32.gmra.mxu0 %v450
        %v472 = vpop.f32.mrf.mxu0
        %v473 = vadd.f32 %v443, %v472
        %474 = vdwg.mxu0
        %v475 = vmax.f32 %v470, 0.0
        %v476 = vmax.f32 %v473, 0.0
        %v477 = vld [vmem:[%s3] sm:$0xff]
        %v478 = vld [vmem:[%s3 + $0x8] sm:$0xff]
        %v479 = vld [vmem:[%s3 + $0x10] sm:$0xff]
        %v480 = vld [vmem:[%s3 + $0x18] sm:$0xff]
        %v481 = vld [vmem:[%s3 + $0x20] sm:$0xff]
        %v482 = vld [vmem:[%s3 + $0x28] sm:$0xff]
        %v483 = vld [vmem:[%s3 + $0x30] sm:$0xff]
        %v484 = vld [vmem:[%s3 + $0x38] sm:$0xff]
        %v485 = vld [vmem:[%s5 + $0x50] sm:$0xff]
        %v486 = vld [vmem:[%s5 + $0x58] sm:$0xff]
        %v487 = vld [vmem:[%s5 + $0x60] sm:$0xff]
        %v488 = vld [vmem:[%s5 + $0x68] sm:$0xff]
        %v489 = vld [vmem:[%s5 + $0x70] sm:$0xff]
        %v490 = vld [vmem:[%s5 + $0x78] sm:$0xff]
        %v491 = vld [vmem:[%s5 + $0x80] sm:$0xff]
        %v492 = vld [vmem:[%s5 + $0x88] sm:$0xff]
        %494 = vset.pattern.permute.xlu0 0
        %495 = vperm.xlu0 %494, %v485
        %v496 = vpop.permute.xlu0 %495
        %499 = vset.pattern.permute.xlu0 0
        %500 = vperm.xlu0 %499, %v486
        %v501 = vpop.permute.xlu0 %500
        %504 = vset.pattern.permute.xlu0 0
        %505 = vperm.xlu0 %504, %v487
        %v506 = vpop.permute.xlu0 %505
        %509 = vset.pattern.permute.xlu0 0
        %510 = vperm.xlu0 %509, %v488
        %v511 = vpop.permute.xlu0 %510
        %514 = vset.pattern.permute.xlu0 0
        %515 = vperm.xlu0 %514, %v489
        %v516 = vpop.permute.xlu0 %515
        %519 = vset.pattern.permute.xlu0 0
        %520 = vperm.xlu0 %519, %v490
        %v521 = vpop.permute.xlu0 %520
        %524 = vset.pattern.permute.xlu0 0
        %525 = vperm.xlu0 %524, %v491
        %v526 = vpop.permute.xlu0 %525
        %529 = vset.pattern.permute.xlu0 0
        %530 = vperm.xlu0 %529, %v492
        %v531 = vpop.permute.xlu0 %530
        %vm533 = vcmask 130048
        %v535 = vsel %vm533, %v477, 0
        %v538 = vsel %vm533, %v478, 0
        %v541 = vsel %vm533, %v479, 0
        %v544 = vsel %vm533, %v480, 0
        %v547 = vsel %vm533, %v481, 0
        %v550 = vsel %vm533, %v482, 0
        %v553 = vsel %vm533, %v483, 0
        %v556 = vsel %vm533, %v484, 0
        %558 = vmatpush.msra.mxu0 0.0
        %559 = vmatpush.msra.mxu0 0.0
        %560 = vmatpush.msra.mxu0 0.0
        %561 = vmatpush.msra.mxu0 0.0
        %562 = vmatpush.msra.mxu0 0.0
        %563 = vmatpush.msra.mxu0 0.0
        %564 = vmatpush.msra.mxu0 0.0
        %565 = vmatpush.msra.mxu0 0.0
        %566 = vmatpush.msra.mxu0 0.0
        %567 = vmatpush.msra.mxu0 0.0
        %568 = vmatpush.msra.mxu0 0.0
        %569 = vmatpush.msra.mxu0 0.0
        %570 = vmatpush.msra.mxu0 0.0
        %571 = vmatpush.msra.mxu0 0.0
        %572 = vmatpush.msra.mxu0 %v476
        %573 = vmatpush.msra.mxu0 %v475
        %574 = vmatmul.f32.gmra.mxu0 %v535
        %v575 = vpop.f32.mrf.mxu0
        %v576 = vadd.f32 %v496, %v575
        %577 = vmatmul.f32.gmra.mxu0 %v538
        %v578 = vpop.f32.mrf.mxu0
        %v579 = vadd.f32 %v501, %v578
        %580 = vmatmul.f32.gmra.mxu0 %v541
        %v581 = vpop.f32.mrf.mxu0
        %v582 = vadd.f32 %v506, %v581
        %583 = vmatmul.f32.gmra.mxu0 %v544
        %v584 = vpop.f32.mrf.mxu0
        %v585 = vadd.f32 %v511, %v584
        %586 = vmatmul.f32.gmra.mxu0 %v547
        %v587 = vpop.f32.mrf.mxu0
        %v588 = vadd.f32 %v516, %v587
        %589 = vmatmul.f32.gmra.mxu0 %v550
        %v590 = vpop.f32.mrf.mxu0
        %v591 = vadd.f32 %v521, %v590
        %592 = vmatmul.f32.gmra.mxu0 %v553
        %v593 = vpop.f32.mrf.mxu0
        %v594 = vadd.f32 %v526, %v593
        %595 = vmatmul.f32.gmra.mxu0 %v556
        %v596 = vpop.f32.mrf.mxu0
        %v597 = vadd.f32 %v531, %v596
        %598 = vdwg.mxu0
        %v599 = vmax.f32 %v576, 0.0
        %v600 = vmax.f32 %v579, 0.0
        %v601 = vmax.f32 %v582, 0.0
        %v602 = vmax.f32 %v585, 0.0
        %v603 = vmax.f32 %v588, 0.0
        %v604 = vmax.f32 %v591, 0.0
        %v605 = vmax.f32 %v594, 0.0
        %v606 = vmax.f32 %v597, 0.0
        %v607 = vld [vmem:[%s4] sm:$0xff]
        %v608 = vld [vmem:[%s4 + $0x8] sm:$0xff]
        %v609 = vld [vmem:[%s4 + $0x10] sm:$0xff]
        %v610 = vld [vmem:[%s4 + $0x18] sm:$0xff]
        %v611 = vld [vmem:[%s5 + $0x90] sm:$0xff]
        %v612 = vld [vmem:[%s5 + $0x98] sm:$0xff]
        %v613 = vld [vmem:[%s5 + $0xa0] sm:$0xff]
        %v614 = vld [vmem:[%s5 + $0xa8] sm:$0xff]
        %616 = vset.pattern.permute.xlu0 0
        %617 = vperm.xlu0 %616, %v611
        %v618 = vpop.permute.xlu0 %617
        %621 = vset.pattern.permute.xlu0 0
        %622 = vperm.xlu0 %621, %v612
        %v623 = vpop.permute.xlu0 %622
        %626 = vset.pattern.permute.xlu0 0
        %627 = vperm.xlu0 %626, %v613
        %v628 = vpop.permute.xlu0 %627
        %631 = vset.pattern.permute.xlu0 0
        %632 = vperm.xlu0 %631, %v614
        %v633 = vpop.permute.xlu0 %632
        %v636 = vsel %vm445, %v607, 0
        %v639 = vsel %vm445, %v608, 0
        %v642 = vsel %vm445, %v609, 0
        %v645 = vsel %vm445, %v610, 0
        %647 = vmatpush.msra.mxu0 0.0
        %648 = vmatpush.msra.mxu0 0.0
        %649 = vmatpush.msra.mxu0 0.0
        %650 = vmatpush.msra.mxu0 0.0
        %651 = vmatpush.msra.mxu0 0.0
        %652 = vmatpush.msra.mxu0 0.0
        %653 = vmatpush.msra.mxu0 0.0
        %654 = vmatpush.msra.mxu0 0.0
        %655 = vmatpush.msra.mxu0 %v606
        %656 = vmatpush.msra.mxu0 %v605
        %657 = vmatpush.msra.mxu0 %v604
        %658 = vmatpush.msra.mxu0 %v603
        %659 = vmatpush.msra.mxu0 %v602
        %660 = vmatpush.msra.mxu0 %v601
        %661 = vmatpush.msra.mxu0 %v600
        %662 = vmatpush.msra.mxu0 %v599
        %663 = vmatmul.f32.gmra.mxu0 %v636
        %v664 = vpop.f32.mrf.mxu0
        %v665 = vadd.f32 %v618, %v664
        %666 = vmatmul.f32.gmra.mxu0 %v639
        %v667 = vpop.f32.mrf.mxu0
        %v668 = vadd.f32 %v623, %v667
        %669 = vmatmul.f32.gmra.mxu0 %v642
        %v670 = vpop.f32.mrf.mxu0
        %v671 = vadd.f32 %v628, %v670
        %672 = vmatmul.f32.gmra.mxu0 %v645
        %v673 = vpop.f32.mrf.mxu0
        %v674 = vadd.f32 %v633, %v673
        %675 = vdwg.mxu0
        %v676 = vmax.f32 %v665, 0.0
        %v677 = vmax.f32 %v668, 0.0
        %v678 = vmax.f32 %v671, 0.0
        %v679 = vmax.f32 %v674, 0.0
        %680 = vst [vmem:[%s296] sm:$0xff] %v676
        %681 = vst [vmem:[%s296 + $0x8] sm:$0xff] %v677
        %682 = vst [vmem:[%s296 + $0x10] sm:$0xff] %v678
        %683 = vst [vmem:[%s296 + $0x18] sm:$0xff] %v679
        %s684 = sand.u32 %s159, 1
        %s685 = scalar_lea.sflag [#allocation4], %s684
        %s686 = sand.u32 %s159, 1
        %s687 = smul.addr %s686, 32
        %s688 = scalar_lea.vmem [#allocation3], %s687
        // Predicated region
        $region83: #{tpu_custom_call.1} parent=77 // pred_check
          %p689 = pneg %p169
        $region84: #{tpu_custom_call.1} parent=77 // pred_check_branch
          %691 = sbr.rel (%p689) target = $region86
        $region85: #{tpu_custom_call.1} parent=77 // pred_region
          %693 = vsyncadd %s685, 0
          %s694 = smul.addr %s20, 8
          %s695 = scalar_lea.hbm %s6, %s694
          %s696 = sshll.u32 %s688, 4
          %s697 = int_to_ptr.vmem [resolvable:$true] %s696
          %s698 = sshll.u32 %s695, 4
          %s699 = int_to_ptr.hbm [resolvable:$true] %s698
          %704 = dma.vmem_to_hbm [thread:$0]  %s697, 512, %s699, %s685, 128, 256, 8
        $region86: #{tpu_custom_call.1} parent=77 // pred_fallthru
          _
      $region78: #{tpu_custom_call.1} parent=5 // pred_fallthru
        _
      %p705 = scmp.le.s32.totalorder 2, %s15
      // Predicated region
      $region87: #{tpu_custom_call.1} parent=5 // pred_check
        %p706 = pneg %p705
      $region88: #{tpu_custom_call.1} parent=5 // pred_check_branch
        %708 = sbr.rel (%p706) target = $region90
      $region89: #{tpu_custom_call.1} parent=5 // pred_region
        %s709 = ssub.s32 %s15, 2
        // Predicated region
        $region91: #{tpu_custom_call.1} parent=89 // pred_check
          %p710 = pneg %p175
        $region92: #{tpu_custom_call.1} parent=89 // pred_check_branch
          %712 = sbr.rel (%p710) target = $region94
        $region93: #{tpu_custom_call.1} parent=89 // pred_region
          %s713 = sand.u32 %s160, 1
          %s714 = scalar_lea.sflag [#allocation4], %s713
          %s715 = sand.u32 %s160, 1
          %s716 = smul.addr %s715, 32
          %s717 = scalar_lea.vmem [#allocation3], %s716
          %719 = dma.done %s714, 512
        $region94: #{tpu_custom_call.1} parent=89 // pred_fallthru
          _
      $region90: #{tpu_custom_call.1} parent=5 // pred_fallthru
        _
    $region6: #{tpu_custom_call.1} parent=1 // loop_footer
      %s19 = sadd.s32 1, %s15
    $region7: #{tpu_custom_call.1} parent=1 // loop_footer_branch
      %14 = sbr.rel target = $region3
    $region8: #{tpu_custom_call.1} parent=1 // loop_exit
      _
    %720 = vsyncpa [#allocation4], 1
    %s721 = scalar_lea.sflag [#allocation4], 1
    %722 = vsyncpa %s721, 1

</llo_original>
